<compile_context>
chip_gen: v5e
topology: v5e:2x2
jax: 0.10.0
libtpu: 0.0.40
codegen_flags: <defaults>
</compile_context>

<pallas_src>
import jax
import jax.numpy as jnp
from jax.experimental import pallas as pl
from jax.experimental.pallas import tpu as pltpu


def _binary_cls_kernel(x_ref, w1_ref, b1_ref, w2_ref, b2_ref, o_ref):
    # x_ref: (TB, F), w1_ref: (F, 1), b1_ref: (1, 1), w2_ref: (1, 2), b2_ref: (1, 2)
    x = x_ref[...]

    # hidden = Linear(F, 1)  (N=1 matmul; MXU occupancy is irrelevant, kernel
    # is HBM-bound on the x read).
    h = jnp.dot(x, w1_ref[...], preferred_element_type=jnp.float32) + b1_ref[...]

    # ReLU
    h = jnp.maximum(h, 0.0)

    # output = Linear(1, 2): rank-1 outer product -> VPU broadcast FMA.
    logits = h * w2_ref[...] + b2_ref[...]          # (TB,1)*(1,2)+(1,2) -> (TB,2)

    # Numerically-stable softmax over the 2-class axis.
    m = jnp.max(logits, axis=1, keepdims=True)
    e = jnp.exp(logits - m)
    denom = jnp.sum(e, axis=1, keepdims=True)
    o_ref[...] = (e * pl.reciprocal(denom, approx=True)).astype(o_ref.dtype)


def binary_classification_forward(x, w1, b1, w2, b2, *, block_b=1024):
    """x: (B, F) f32; w1: (F, 1); b1: (1,); w2: (1, 2); b2: (2,)  -> (B, 2) f32."""
    x = x.astype(jnp.float32)
    B, F = x.shape
    w1_2d = w1.reshape(F, 1).astype(jnp.float32)
    b1_2d = b1.reshape(1, 1).astype(jnp.float32)
    w2_2d = w2.reshape(1, 2).astype(jnp.float32)
    b2_2d = b2.reshape(1, 2).astype(jnp.float32)

    # Batch tile: multiple of 8 (f32 sublane), capped at block_b rows.
    tb = max(8, min(block_b, ((B + 7) // 8) * 8))
    grid = (pl.cdiv(B, tb),)

    const = lambda shape: pl.BlockSpec(shape, lambda i: (0, 0))

    return pl.pallas_call(
        _binary_cls_kernel,
        out_shape=jax.ShapeDtypeStruct((B, 2), jnp.float32),
        grid=grid,
        in_specs=[
            pl.BlockSpec((tb, F), lambda i: (i, 0)),   # x: tiled over batch
            const((F, 1)),                             # w1: VMEM-resident
            const((1, 1)),                             # b1
            const((1, 2)),                             # w2
            const((1, 2)),                             # b2
        ],
        out_specs=pl.BlockSpec((tb, 2), lambda i: (i, 0)),
        compiler_params=pltpu.CompilerParams(
            dimension_semantics=("parallel",),         # shard batch tiles across TCs (v7x)
            vmem_limit_bytes=32 * 1024 * 1024,         # explicit scoped-VMEM budget
        ),
    )(x, w1_2d, b1_2d, w2_2d, b2_2d)


def reference_forward(x, w1, b1, w2, b2):
    h = jnp.maximum(x @ w1 + b1.reshape(1, 1), 0.0)
    logits = h @ w2 + b2.reshape(1, 2)
    return jax.nn.softmax(logits, axis=1)


if __name__ == "__main__":
    B = 256         # small batch: 2 grid steps of 128 rows -> exercises the DMA pipeline
    NUM = 32        # num_features (the `num` arg of BinaryClassifcation)

    key = jax.random.PRNGKey(0)
    kx, kw1, kb1, kw2, kb2 = jax.random.split(key, 5)

    # PyTorch shapes: hidden.weight (1, NUM), hidden.bias (1,),
    # output.weight (2, 1), output.bias (2,); stored pre-transposed as [in, out].
    x = jax.random.normal(kx, (B, NUM), dtype=jnp.float32)
    w1 = jax.random.normal(kw1, (NUM, 1), dtype=jnp.float32) * 0.1   # hidden.weight.T
    b1 = jax.random.normal(kb1, (1,), dtype=jnp.float32) * 0.1       # hidden.bias
    w2 = jax.random.normal(kw2, (1, 2), dtype=jnp.float32) * 0.1     # output.weight.T
    b2 = jax.random.normal(kb2, (2,), dtype=jnp.float32) * 0.1       # output.bias

    out = jax.block_until_ready(
        binary_classification_forward(x, w1, b1, w2, b2, block_b=128)
    )

    ref = reference_forward(x, w1, b1, w2, b2)
    assert out.shape == (B, 2)
    # Tolerances account for the approximate EUP reciprocal in the softmax.
    assert jnp.allclose(out, ref, atol=5e-3, rtol=5e-3)
    assert jnp.allclose(jnp.sum(out, axis=1), 1.0, atol=5e-3)

    print("KERNEL_OK")
</pallas_src>

<mosaic_0001>
module attributes {stable_mosaic.version = 11 : i64} {
  func.func @_binary_cls_kernel(%arg0: i32, %arg1: memref<128x32xf32, #tpu.memory_space<vmem>>, %arg2: memref<32x1xf32, #tpu.memory_space<vmem>>, %arg3: memref<1x1xf32, #tpu.memory_space<vmem>>, %arg4: memref<1x2xf32, #tpu.memory_space<vmem>>, %arg5: memref<1x2xf32, #tpu.memory_space<vmem>>, %arg6: memref<128x2xf32, #tpu.memory_space<vmem>>) attributes {dimension_semantics = [#tpu.dimension_semantics<parallel>], iteration_bounds = array<i64: 2>, scalar_prefetch = 0 : i64, scratch_operands = 0 : i64, tpu.core_type = #tpu.core_type<tc>, window_params = [{transform_indices = @transform_0, window_bounds = array<i64: 128, 32>}, {pipeline_mode = #tpu.pipeline_mode<synchronous>, transform_indices = @transform_1, window_bounds = array<i64: 32, 1>}, {pipeline_mode = #tpu.pipeline_mode<synchronous>, transform_indices = @transform_2, window_bounds = array<i64: 1, 1>}, {pipeline_mode = #tpu.pipeline_mode<synchronous>, transform_indices = @transform_3, window_bounds = array<i64: 1, 2>}, {pipeline_mode = #tpu.pipeline_mode<synchronous>, transform_indices = @transform_4, window_bounds = array<i64: 1, 2>}, {transform_indices = @transform_5, window_bounds = array<i64: 128, 2>}]} {
    %c0 = arith.constant 0 : index
    %c0_0 = arith.constant 0 : index
    %0 = vector.load %arg1[%c0, %c0_0] : memref<128x32xf32, #tpu.memory_space<vmem>>, vector<128x32xf32>
    %c0_1 = arith.constant 0 : index
    %c0_2 = arith.constant 0 : index
    %1 = vector.load %arg2[%c0_1, %c0_2] : memref<32x1xf32, #tpu.memory_space<vmem>>, vector<32x1xf32>
    %cst = arith.constant dense<0.000000e+00> : vector<128x1xf32>
    %2 = tpu.matmul %0, %1, %cst {dimension_numbers = #tpu.dot_dimension_numbers<[1], [0], [0], [1], [0, 0, 1, 1], [], []>} : vector<128x32xf32>, vector<32x1xf32>, vector<128x1xf32> -> vector<128x1xf32>
    %c0_3 = arith.constant 0 : index
    %c0_4 = arith.constant 0 : index
    %3 = vector.load %arg3[%c0_3, %c0_4] : memref<1x1xf32, #tpu.memory_space<vmem>>, vector<1x1xf32>
    %4 = vector.broadcast %3 : vector<1x1xf32> to vector<128x1xf32>
    %5 = arith.addf %2, %4 : vector<128x1xf32>
    %cst_5 = arith.constant 0.000000e+00 : f32
    %6 = vector.broadcast %cst_5 : f32 to vector<128x1xf32>
    %7 = arith.maximumf %5, %6 : vector<128x1xf32>
    %c0_6 = arith.constant 0 : index
    %c0_7 = arith.constant 0 : index
    %8 = vector.load %arg4[%c0_6, %c0_7] : memref<1x2xf32, #tpu.memory_space<vmem>>, vector<1x2xf32>
    %9 = vector.broadcast %7 : vector<128x1xf32> to vector<128x2xf32>
    %10 = vector.broadcast %8 : vector<1x2xf32> to vector<128x2xf32>
    %11 = arith.mulf %9, %10 : vector<128x2xf32>
    %c0_8 = arith.constant 0 : index
    %c0_9 = arith.constant 0 : index
    %12 = vector.load %arg5[%c0_8, %c0_9] : memref<1x2xf32, #tpu.memory_space<vmem>>, vector<1x2xf32>
    %13 = vector.broadcast %12 : vector<1x2xf32> to vector<128x2xf32>
    %14 = arith.addf %11, %13 : vector<128x2xf32>
    %cst_10 = arith.constant dense<0xFF800000> : vector<128xf32>
    %15 = vector.multi_reduction <maximumf>, %14, %cst_10 [1] : vector<128x2xf32> to vector<128xf32>
    %16 = vector.shape_cast %15 : vector<128xf32> to vector<128x1xf32>
    %17 = vector.broadcast %16 : vector<128x1xf32> to vector<128x2xf32>
    %18 = arith.subf %14, %17 : vector<128x2xf32>
    %19 = math.exp %18 : vector<128x2xf32>
    %cst_11 = arith.constant dense<0.000000e+00> : vector<128xf32>
    %20 = vector.multi_reduction <add>, %19, %cst_11 [1] : vector<128x2xf32> to vector<128xf32>
    %21 = vector.shape_cast %20 : vector<128xf32> to vector<128x1xf32>
    %22 = tpu.reciprocal %21 {approx = true} : vector<128x1xf32> -> vector<128x1xf32>
    %23 = vector.broadcast %22 : vector<128x1xf32> to vector<128x2xf32>
    %24 = arith.mulf %19, %23 : vector<128x2xf32>
    %c0_12 = arith.constant 0 : index
    %c0_13 = arith.constant 0 : index
    %25 = vector.load %arg6[%c0_12, %c0_13] : memref<128x2xf32, #tpu.memory_space<vmem>>, vector<128x2xf32>
    tpu.vector_store %arg6[%c0_12, %c0_13], %24 {strides = array<i32>} : memref<128x2xf32, #tpu.memory_space<vmem>>, vector<128x2xf32>,
    return
  }
  func.func @transform_0(%arg0: i32) -> (i32, i32) {
    %c0_i32 = arith.constant 0 : i32
    %c0_i32_0 = arith.constant 0 : i32
    return %arg0, %c0_i32 : i32, i32
  }
  func.func @transform_1(%arg0: i32) -> (i32, i32) {
    %c0_i32 = arith.constant 0 : i32
    %c0_i32_0 = arith.constant 0 : i32
    %c0_i32_1 = arith.constant 0 : i32
    return %c0_i32, %c0_i32_0 : i32, i32
  }
  func.func @transform_2(%arg0: i32) -> (i32, i32) {
    %c0_i32 = arith.constant 0 : i32
    %c0_i32_0 = arith.constant 0 : i32
    %c0_i32_1 = arith.constant 0 : i32
    return %c0_i32, %c0_i32_0 : i32, i32
  }
  func.func @transform_3(%arg0: i32) -> (i32, i32) {
    %c0_i32 = arith.constant 0 : i32
    %c0_i32_0 = arith.constant 0 : i32
    %c0_i32_1 = arith.constant 0 : i32
    return %c0_i32, %c0_i32_0 : i32, i32
  }
  func.func @transform_4(%arg0: i32) -> (i32, i32) {
    %c0_i32 = arith.constant 0 : i32
    %c0_i32_0 = arith.constant 0 : i32
    %c0_i32_1 = arith.constant 0 : i32
    return %c0_i32, %c0_i32_0 : i32, i32
  }
  func.func @transform_5(%arg0: i32) -> (i32, i32) {
    %c0_i32 = arith.constant 0 : i32
    %c0_i32_0 = arith.constant 0 : i32
    return %arg0, %c0_i32 : i32, i32
  }
}

</mosaic_0001>

<llo_original>
// kernel: tpu_custom_call.1
$region0: #{tpu_custom_call.1}
  #allocation0 [shape = 'u32[]', space=smem, size = 0x4, offset = 0x4, fixed_abs, tag = 'smem constant byte address 0x4 - core index']
  #allocation1 [shape = 'u32[72,128]{1,0:T(1,128)}', space=vmem, size = 0x9000, scoped, tag = 'internal scratch']
  #allocation2 [shape = 'f32[1,1]{1,0:T(1,128)S(1)}', space=vmem, size = 0x200, scoped, tag = 'scoped memory for tpu_custom_call.1']
  %s0 = inlined_call_operand.vmem [shape: f32[256,32], index: 0, kind: input, shape index: {}]
  %s1 = inlined_call_operand.vmem [shape: f32[32,1], index: 1, kind: input, shape index: {}]
  %s2 = inlined_call_operand.<no memory space> [shape: f32[1,1], index: 2, kind: input, shape index: {}]
  %s3 = inlined_call_operand.vmem [shape: f32[1,2], index: 3, kind: input, shape index: {}]
  %s4 = inlined_call_operand.vmem [shape: f32[1,2], index: 4, kind: input, shape index: {}]
  %s5 = inlined_call_operand.vmem [shape: f32[256,2], index: 5, kind: output, shape index: {}]
  %s6 = sld [smem:[#allocation0]]
  $region53: #{tpu_custom_call.1} parent=0
    _
  %s8 = ssub.s32 1, %s6
  %s9 = scalar_select 0, %s8, %s6
  %v10 = vstv %s2
  %11 = vst [vmem:[#allocation2] sm:$0x1] %v10
  loop: start=0, step=1, limit=4
  $region2: #{tpu_custom_call.1} parent=0 // loop_pre_header
    _
  $region3: #{tpu_custom_call.1} parent=0 // loop_header
    %s13 = sphi 0, %s17
    %p14 = scmp.ge.s32.totalorder %s13, 4
    %s23 = sphi 0, %s25
    %s26 = sphi 0, %s23
    %s27 = sphi 0, %s26
    %s43 = sphi 0, %s27
    %s47 = sphi 0, %s47
    %s49 = sphi 0, %s47
    %s50 = sphi 0, %s49
    %s64 = sphi 0, %s50
    %s68 = sphi 0, %s68
    %s70 = sphi 0, %s68
    %s71 = sphi 0, %s70
    %s85 = sphi 0, %s71
    %s89 = sphi 0, %s89
    %s91 = sphi 0, %s89
    %s92 = sphi 0, %s91
    %s106 = sphi 0, %s92
    %s110 = sphi 0, %s110
    %s112 = sphi 0, %s110
    %s113 = sphi 0, %s112
    %s127 = sphi 0, %s113
    %s133 = sphi 0, %s135
    %s136 = sphi 0, %s133
    %s137 = sphi 0, %s136
    %s153 = sphi 0, %s137
  $region4: #{tpu_custom_call.1} parent=0 // loop_header_branch
    %16 = sbr.rel (%p14) target = $region8
  $region5: #{tpu_custom_call.1} parent=0 // loop_body
    %s18 = ssub.s32 %s13, 1
    %s19 = ssub.s32 %s13, 2
    %s20 = sadd.s32 %s13, 1
    %s21 = ssub.s32 %s13, %s20
    %p22 = scmp.eq.s32.totalorder %s21, 0
    %s24 = sadd.s32 %s23, 1
    %s25 = scalar_select %p22, %s23, %s24
    %p28 = pneg %p22
    %p29 = scmp.eq.s32.totalorder %s13, 1
    %p30 = por %p28, %p29
    %p31 = scmp.ne.s32.totalorder %s23, %s26
    %p32 = scmp.eq.s32.totalorder %s13, 0
    %p33 = por %p31, %p32
    %p34 = scmp.ne.s32.totalorder %s23, %s26
    %p35 = scmp.eq.s32.totalorder %s18, 1
    %p36 = por %p34, %p35
    %p37 = scmp.ne.s32.totalorder %s26, %s27
    %p38 = scmp.eq.s32.totalorder %s18, 0
    %p39 = por %p37, %p38
    %p40 = scmp.ne.s32.totalorder %s26, %s27
    %p41 = scmp.eq.s32.totalorder %s19, 1
    %p42 = por %p40, %p41
    %p44 = scmp.ne.s32.totalorder %s27, %s43
    %p45 = scmp.eq.s32.totalorder %s19, 0
    %p46 = por %p44, %p45
    %s48 = sadd.s32 %s47, 1
    %p51 = scmp.eq.s32.totalorder %s13, 1
    %p52 = scmp.ne.s32.totalorder %s47, %s49
    %p53 = scmp.eq.s32.totalorder %s13, 0
    %p54 = por %p52, %p53
    %p55 = scmp.ne.s32.totalorder %s47, %s49
    %p56 = scmp.eq.s32.totalorder %s18, 1
    %p57 = por %p55, %p56
    %p58 = scmp.ne.s32.totalorder %s49, %s50
    %p59 = scmp.eq.s32.totalorder %s18, 0
    %p60 = por %p58, %p59
    %p61 = scmp.ne.s32.totalorder %s49, %s50
    %p62 = scmp.eq.s32.totalorder %s19, 1
    %p63 = por %p61, %p62
    %p65 = scmp.ne.s32.totalorder %s50, %s64
    %p66 = scmp.eq.s32.totalorder %s19, 0
    %p67 = por %p65, %p66
    %s69 = sadd.s32 %s68, 1
    %p72 = scmp.eq.s32.totalorder %s13, 1
    %p73 = scmp.ne.s32.totalorder %s68, %s70
    %p74 = scmp.eq.s32.totalorder %s13, 0
    %p75 = por %p73, %p74
    %p76 = scmp.ne.s32.totalorder %s68, %s70
    %p77 = scmp.eq.s32.totalorder %s18, 1
    %p78 = por %p76, %p77
    %p79 = scmp.ne.s32.totalorder %s70, %s71
    %p80 = scmp.eq.s32.totalorder %s18, 0
    %p81 = por %p79, %p80
    %p82 = scmp.ne.s32.totalorder %s70, %s71
    %p83 = scmp.eq.s32.totalorder %s19, 1
    %p84 = por %p82, %p83
    %p86 = scmp.ne.s32.totalorder %s71, %s85
    %p87 = scmp.eq.s32.totalorder %s19, 0
    %p88 = por %p86, %p87
    %s90 = sadd.s32 %s89, 1
    %p93 = scmp.eq.s32.totalorder %s13, 1
    %p94 = scmp.ne.s32.totalorder %s89, %s91
    %p95 = scmp.eq.s32.totalorder %s13, 0
    %p96 = por %p94, %p95
    %p97 = scmp.ne.s32.totalorder %s89, %s91
    %p98 = scmp.eq.s32.totalorder %s18, 1
    %p99 = por %p97, %p98
    %p100 = scmp.ne.s32.totalorder %s91, %s92
    %p101 = scmp.eq.s32.totalorder %s18, 0
    %p102 = por %p100, %p101
    %p103 = scmp.ne.s32.totalorder %s91, %s92
    %p104 = scmp.eq.s32.totalorder %s19, 1
    %p105 = por %p103, %p104
    %p107 = scmp.ne.s32.totalorder %s92, %s106
    %p108 = scmp.eq.s32.totalorder %s19, 0
    %p109 = por %p107, %p108
    %s111 = sadd.s32 %s110, 1
    %p114 = scmp.eq.s32.totalorder %s13, 1
    %p115 = scmp.ne.s32.totalorder %s110, %s112
    %p116 = scmp.eq.s32.totalorder %s13, 0
    %p117 = por %p115, %p116
    %p118 = scmp.ne.s32.totalorder %s110, %s112
    %p119 = scmp.eq.s32.totalorder %s18, 1
    %p120 = por %p118, %p119
    %p121 = scmp.ne.s32.totalorder %s112, %s113
    %p122 = scmp.eq.s32.totalorder %s18, 0
    %p123 = por %p121, %p122
    %p124 = scmp.ne.s32.totalorder %s112, %s113
    %p125 = scmp.eq.s32.totalorder %s19, 1
    %p126 = por %p124, %p125
    %p128 = scmp.ne.s32.totalorder %s113, %s127
    %p129 = scmp.eq.s32.totalorder %s19, 0
    %p130 = por %p128, %p129
    %s131 = ssub.s32 %s13, %s20
    %p132 = scmp.eq.s32.totalorder %s131, 0
    %s134 = sadd.s32 %s133, 1
    %s135 = scalar_select %p132, %s133, %s134
    %p138 = pneg %p132
    %p139 = scmp.eq.s32.totalorder %s13, 1
    %p140 = por %p138, %p139
    %p141 = scmp.ne.s32.totalorder %s133, %s136
    %p142 = scmp.eq.s32.totalorder %s13, 0
    %p143 = por %p141, %p142
    %p144 = scmp.ne.s32.totalorder %s133, %s136
    %p145 = scmp.eq.s32.totalorder %s18, 1
    %p146 = por %p144, %p145
    %p147 = scmp.ne.s32.totalorder %s136, %s137
    %p148 = scmp.eq.s32.totalorder %s18, 0
    %p149 = por %p147, %p148
    %p150 = scmp.ne.s32.totalorder %s136, %s137
    %p151 = scmp.eq.s32.totalorder %s19, 1
    %p152 = por %p150, %p151
    %p154 = scmp.ne.s32.totalorder %s137, %s153
    %p155 = scmp.eq.s32.totalorder %s19, 0
    %p156 = por %p154, %p155
    %p157 = scmp.le.s32.totalorder 1, %s13
    %p158 = scmp.lt.s32.totalorder %s13, 3
    %p159 = pnand %p157, %p158
    %p160 = pneg %p159
    // Predicated region
    $region9: #{tpu_custom_call.1} parent=5 // pred_check
      _
    $region10: #{tpu_custom_call.1} parent=5 // pred_check_branch
      %162 = sbr.rel (%p159) target = $region12
    $region11: #{tpu_custom_call.1} parent=5 // pred_region
      %s163 = ssub.s32 %s13, 1
      // Predicated region
      $region13: #{tpu_custom_call.1} parent=11 // pred_check
        %p164 = pneg %p60
      $region14: #{tpu_custom_call.1} parent=11 // pred_check_branch
        %166 = sbr.rel (%p164) target = $region16
      $region15: #{tpu_custom_call.1} parent=11 // pred_region
        _
      $region16: #{tpu_custom_call.1} parent=11 // pred_fallthru
        _
      // Predicated region
      $region17: #{tpu_custom_call.1} parent=11 // pred_check
        %p167 = pneg %p81
      $region18: #{tpu_custom_call.1} parent=11 // pred_check_branch
        %169 = sbr.rel (%p167) target = $region20
      $region19: #{tpu_custom_call.1} parent=11 // pred_region
        _
      $region20: #{tpu_custom_call.1} parent=11 // pred_fallthru
        _
      // Predicated region
      $region21: #{tpu_custom_call.1} parent=11 // pred_check
        %p170 = pneg %p102
      $region22: #{tpu_custom_call.1} parent=11 // pred_check_branch
        %172 = sbr.rel (%p170) target = $region24
      $region23: #{tpu_custom_call.1} parent=11 // pred_region
        _
      $region24: #{tpu_custom_call.1} parent=11 // pred_fallthru
        _
      // Predicated region
      $region25: #{tpu_custom_call.1} parent=11 // pred_check
        %p173 = pneg %p123
      $region26: #{tpu_custom_call.1} parent=11 // pred_check_branch
        %175 = sbr.rel (%p173) target = $region28
      $region27: #{tpu_custom_call.1} parent=11 // pred_region
        _
      $region28: #{tpu_custom_call.1} parent=11 // pred_fallthru
        _
    $region12: #{tpu_custom_call.1} parent=5 // pred_fallthru
      _
    %p176 = scmp.lt.s32.totalorder %s13, 2
    // Predicated region
    $region29: #{tpu_custom_call.1} parent=5 // pred_check
      %p177 = pneg %p176
    $region30: #{tpu_custom_call.1} parent=5 // pred_check_branch
      %179 = sbr.rel (%p177) target = $region32
    $region31: #{tpu_custom_call.1} parent=5 // pred_region
      // Predicated region
      $region33: #{tpu_custom_call.1} parent=31 // pred_check
        %p180 = pneg %p33
      $region34: #{tpu_custom_call.1} parent=31 // pred_check_branch
        %182 = sbr.rel (%p180) target = $region36
      $region35: #{tpu_custom_call.1} parent=31 // pred_region
        %s183 = smul.u32 16, %s13
        %p184 = scmp.lt.s32.totalorder %s183, 31
        %s185 = scalar_select %p184, %s183, 31
        %s186 = smul.addr %s185, 8
        %s187 = scalar_lea.vmem %s0, %s186
        %s188 = smul.u32 16, %s13
      $region36: #{tpu_custom_call.1} parent=31 // pred_fallthru
        _
    $region32: #{tpu_custom_call.1} parent=5 // pred_fallthru
      _
    %p189 = scmp.le.s32.totalorder 1, %s13
    %p190 = scmp.lt.s32.totalorder %s13, 3
    %p191 = pnand %p189, %p190
    %p192 = pneg %p191
    // Predicated region
    $region37: #{tpu_custom_call.1} parent=5 // pred_check
      _
    $region38: #{tpu_custom_call.1} parent=5 // pred_check_branch
      %194 = sbr.rel (%p191) target = $region40
    $region39: #{tpu_custom_call.1} parent=5 // pred_region
      %s195 = ssub.s32 %s13, 1
      %s196 = smul.u32 16, %s18
      %p197 = scmp.lt.s32.totalorder %s196, 31
      %s198 = scalar_select %p197, %s196, 31
      %s199 = smul.addr %s198, 8
      %s200 = scalar_lea.vmem %s0, %s199
      %p201 = pneg %p39
      %p202 = pneg %p36
      %p203 = pneg %p60
      %p204 = pneg %p57
      %p205 = pneg %p81
      %p206 = pneg %p78
      %p207 = pneg %p102
      %p208 = pneg %p99
      %p209 = pneg %p123
      %p210 = pneg %p120
      %p211 = pneg %p149
      %p212 = pneg %p146
      %s213 = smul.u32 16, %s18
      %p214 = scmp.lt.s32.totalorder %s213, 31
      %s215 = scalar_select %p214, %s213, 31
      %s216 = smul.addr %s215, 8
      %s217 = scalar_lea.vmem %s5, %s216
      %s218 = smul.u32 16, %s18
      %p219 = scmp.lt.s32.totalorder %s218, 31
      %s220 = scalar_select %p219, %s218, 31
      %s221 = smul.addr %s220, 8
      %s222 = scalar_lea.vmem %s0, %s221
      %s223 = smul.u32 16, %s18
      %s224 = smul.u32 16, %s18
      %p225 = scmp.lt.s32.totalorder %s224, 31
      %s226 = scalar_select %p225, %s224, 31
      %s227 = smul.addr %s226, 8
      %s228 = scalar_lea.vmem %s5, %s227
      %s229 = smul.u32 16, %s18
      %v230 = vld [vmem:[%s222] sm:$0xff]
      %v231 = vld [vmem:[%s222 + $0x8] sm:$0xff]
      %v232 = vld [vmem:[%s222 + $0x10] sm:$0xff]
      %v233 = vld [vmem:[%s222 + $0x18] sm:$0xff]
      %v234 = vld [vmem:[%s222 + $0x20] sm:$0xff]
      %v235 = vld [vmem:[%s222 + $0x28] sm:$0xff]
      %v236 = vld [vmem:[%s222 + $0x30] sm:$0xff]
      %v237 = vld [vmem:[%s222 + $0x38] sm:$0xff]
      %v238 = vld [vmem:[%s222 + $0x40] sm:$0xff]
      %v239 = vld [vmem:[%s222 + $0x48] sm:$0xff]
      %v240 = vld [vmem:[%s222 + $0x50] sm:$0xff]
      %v241 = vld [vmem:[%s222 + $0x58] sm:$0xff]
      %v242 = vld [vmem:[%s222 + $0x60] sm:$0xff]
      %v243 = vld [vmem:[%s222 + $0x68] sm:$0xff]
      %v244 = vld [vmem:[%s222 + $0x70] sm:$0xff]
      %v245 = vld [vmem:[%s222 + $0x78] sm:$0xff]
      %v246 = vld [vmem:[%s1] sm:$0xff]
      %v247 = vld [vmem:[%s1 + $0x8] sm:$0xff]
      %v248 = vld [vmem:[%s1 + $0x10] sm:$0xff]
      %v249 = vld [vmem:[%s1 + $0x18] sm:$0xff]
      %v250 = vld [vmem:[#allocation2] sm:$0x1]
      %v252 = vperm.slane %v250, 0
      %vm254 = vcmask 261120
      %v256 = vsel %vm254, %v230, 0
      %v259 = vsel %vm254, %v231, 0
      %v262 = vsel %vm254, %v232, 0
      %v265 = vsel %vm254, %v233, 0
      %v268 = vsel %vm254, %v234, 0
      %v271 = vsel %vm254, %v235, 0
      %v274 = vsel %vm254, %v236, 0
      %v277 = vsel %vm254, %v237, 0
      %v280 = vsel %vm254, %v238, 0
      %v283 = vsel %vm254, %v239, 0
      %v286 = vsel %vm254, %v240, 0
      %v289 = vsel %vm254, %v241, 0
      %v292 = vsel %vm254, %v242, 0
      %v295 = vsel %vm254, %v243, 0
      %v298 = vsel %vm254, %v244, 0
      %v301 = vsel %vm254, %v245, 0
      %303 = vmatpush.msra.mxu0 0.0
      %304 = vmatpush.msra.mxu0 0.0
      %305 = vmatpush.msra.mxu0 0.0
      %306 = vmatpush.msra.mxu0 0.0
      %307 = vmatpush.msra.mxu0 0.0
      %308 = vmatpush.msra.mxu0 0.0
      %309 = vmatpush.msra.mxu0 0.0
      %310 = vmatpush.msra.mxu0 0.0
      %311 = vmatpush.msra.mxu0 0.0
      %312 = vmatpush.msra.mxu0 0.0
      %313 = vmatpush.msra.mxu0 0.0
      %314 = vmatpush.msra.mxu0 0.0
      %315 = vmatpush.msra.mxu0 %v249
      %316 = vmatpush.msra.mxu0 %v248
      %317 = vmatpush.msra.mxu0 %v247
      %318 = vmatpush.msra.mxu0 %v246
      %319 = vmatmul.f32.gmra.mxu0 %v256
      %v320 = vpop.f32.mrf.mxu0
      %v321 = vadd.f32 %v252, %v320
      %322 = vmatmul.f32.gmra.mxu0 %v259
      %v323 = vpop.f32.mrf.mxu0
      %v324 = vadd.f32 %v252, %v323
      %325 = vmatmul.f32.gmra.mxu0 %v262
      %v326 = vpop.f32.mrf.mxu0
      %v327 = vadd.f32 %v252, %v326
      %328 = vmatmul.f32.gmra.mxu0 %v265
      %v329 = vpop.f32.mrf.mxu0
      %v330 = vadd.f32 %v252, %v329
      %331 = vmatmul.f32.gmra.mxu0 %v268
      %v332 = vpop.f32.mrf.mxu0
      %v333 = vadd.f32 %v252, %v332
      %334 = vmatmul.f32.gmra.mxu0 %v271
      %v335 = vpop.f32.mrf.mxu0
      %v336 = vadd.f32 %v252, %v335
      %337 = vmatmul.f32.gmra.mxu0 %v274
      %v338 = vpop.f32.mrf.mxu0
      %v339 = vadd.f32 %v252, %v338
      %340 = vmatmul.f32.gmra.mxu0 %v277
      %v341 = vpop.f32.mrf.mxu0
      %v342 = vadd.f32 %v252, %v341
      %343 = vmatmul.f32.gmra.mxu0 %v280
      %v344 = vpop.f32.mrf.mxu0
      %v345 = vadd.f32 %v252, %v344
      %346 = vmatmul.f32.gmra.mxu0 %v283
      %v347 = vpop.f32.mrf.mxu0
      %v348 = vadd.f32 %v252, %v347
      %349 = vmatmul.f32.gmra.mxu0 %v286
      %v350 = vpop.f32.mrf.mxu0
      %v351 = vadd.f32 %v252, %v350
      %352 = vmatmul.f32.gmra.mxu0 %v289
      %v353 = vpop.f32.mrf.mxu0
      %v354 = vadd.f32 %v252, %v353
      %355 = vmatmul.f32.gmra.mxu0 %v292
      %v356 = vpop.f32.mrf.mxu0
      %v357 = vadd.f32 %v252, %v356
      %358 = vmatmul.f32.gmra.mxu0 %v295
      %v359 = vpop.f32.mrf.mxu0
      %v360 = vadd.f32 %v252, %v359
      %361 = vmatmul.f32.gmra.mxu0 %v298
      %v362 = vpop.f32.mrf.mxu0
      %v363 = vadd.f32 %v252, %v362
      %364 = vmatmul.f32.gmra.mxu0 %v301
      %v365 = vpop.f32.mrf.mxu0
      %v366 = vadd.f32 %v252, %v365
      %367 = vdwg.mxu0
      %v368 = vmax.f32 %v321, 0.0
      %v369 = vmax.f32 %v324, 0.0
      %v370 = vmax.f32 %v327, 0.0
      %v371 = vmax.f32 %v330, 0.0
      %v372 = vmax.f32 %v333, 0.0
      %v373 = vmax.f32 %v336, 0.0
      %v374 = vmax.f32 %v339, 0.0
      %v375 = vmax.f32 %v342, 0.0
      %v376 = vmax.f32 %v345, 0.0
      %v377 = vmax.f32 %v348, 0.0
      %v378 = vmax.f32 %v351, 0.0
      %v379 = vmax.f32 %v354, 0.0
      %v380 = vmax.f32 %v357, 0.0
      %v381 = vmax.f32 %v360, 0.0
      %v382 = vmax.f32 %v363, 0.0
      %v383 = vmax.f32 %v366, 0.0
      %v384 = vld [vmem:[%s3] sm:$0x1]
      %386 = vset.pattern.permute.xlu0 0
      %387 = vperm.xlu0 %386, %v368
      %v388 = vpop.permute.xlu0 %387
      %391 = vset.pattern.permute.xlu0 0
      %392 = vperm.xlu0 %391, %v369
      %v393 = vpop.permute.xlu0 %392
      %396 = vset.pattern.permute.xlu0 0
      %397 = vperm.xlu0 %396, %v370
      %v398 = vpop.permute.xlu0 %397
      %401 = vset.pattern.permute.xlu0 0
      %402 = vperm.xlu0 %401, %v371
      %v403 = vpop.permute.xlu0 %402
      %406 = vset.pattern.permute.xlu0 0
      %407 = vperm.xlu0 %406, %v372
      %v408 = vpop.permute.xlu0 %407
      %411 = vset.pattern.permute.xlu0 0
      %412 = vperm.xlu0 %411, %v373
      %v413 = vpop.permute.xlu0 %412
      %416 = vset.pattern.permute.xlu0 0
      %417 = vperm.xlu0 %416, %v374
      %v418 = vpop.permute.xlu0 %417
      %421 = vset.pattern.permute.xlu0 0
      %422 = vperm.xlu0 %421, %v375
      %v423 = vpop.permute.xlu0 %422
      %426 = vset.pattern.permute.xlu0 0
      %427 = vperm.xlu0 %426, %v376
      %v428 = vpop.permute.xlu0 %427
      %431 = vset.pattern.permute.xlu0 0
      %432 = vperm.xlu0 %431, %v377
      %v433 = vpop.permute.xlu0 %432
      %436 = vset.pattern.permute.xlu0 0
      %437 = vperm.xlu0 %436, %v378
      %v438 = vpop.permute.xlu0 %437
      %441 = vset.pattern.permute.xlu0 0
      %442 = vperm.xlu0 %441, %v379
      %v443 = vpop.permute.xlu0 %442
      %446 = vset.pattern.permute.xlu0 0
      %447 = vperm.xlu0 %446, %v380
      %v448 = vpop.permute.xlu0 %447
      %451 = vset.pattern.permute.xlu0 0
      %452 = vperm.xlu0 %451, %v381
      %v453 = vpop.permute.xlu0 %452
      %456 = vset.pattern.permute.xlu0 0
      %457 = vperm.xlu0 %456, %v382
      %v458 = vpop.permute.xlu0 %457
      %461 = vset.pattern.permute.xlu0 0
      %462 = vperm.xlu0 %461, %v383
      %v463 = vpop.permute.xlu0 %462
      %v466 = vperm.slane %v384, 0
      %v468 = vmul.f32 %v388, %v466
      %v469 = vmul.f32 %v393, %v466
      %v470 = vmul.f32 %v398, %v466
      %v471 = vmul.f32 %v403, %v466
      %v472 = vmul.f32 %v408, %v466
      %v473 = vmul.f32 %v413, %v466
      %v474 = vmul.f32 %v418, %v466
      %v475 = vmul.f32 %v423, %v466
      %v476 = vmul.f32 %v428, %v466
      %v477 = vmul.f32 %v433, %v466
      %v478 = vmul.f32 %v438, %v466
      %v479 = vmul.f32 %v443, %v466
      %v480 = vmul.f32 %v448, %v466
      %v481 = vmul.f32 %v453, %v466
      %v482 = vmul.f32 %v458, %v466
      %v483 = vmul.f32 %v463, %v466
      %v484 = vld [vmem:[%s4] sm:$0x1]
      %v486 = vperm.slane %v484, 0
      %v488 = vadd.f32 %v468, %v486
      %v489 = vadd.f32 %v469, %v486
      %v490 = vadd.f32 %v470, %v486
      %v491 = vadd.f32 %v471, %v486
      %v492 = vadd.f32 %v472, %v486
      %v493 = vadd.f32 %v473, %v486
      %v494 = vadd.f32 %v474, %v486
      %v495 = vadd.f32 %v475, %v486
      %v496 = vadd.f32 %v476, %v486
      %v497 = vadd.f32 %v477, %v486
      %v498 = vadd.f32 %v478, %v486
      %v499 = vadd.f32 %v479, %v486
      %v500 = vadd.f32 %v480, %v486
      %v501 = vadd.f32 %v481, %v486
      %v502 = vadd.f32 %v482, %v486
      %v503 = vadd.f32 %v483, %v486
      %vm504 = vcmask 15360
      %v505 = vsel %vm504, %v488, -inf
      %506 = vmax.xlane.f32.xlu0 %v505
      %v507 = vpop.xlane.xlu0 %506
      %v508 = vsel %vm504, %v489, -inf
      %509 = vmax.xlane.f32.xlu0 %v508
      %v510 = vpop.xlane.xlu0 %509
      %v511 = vsel %vm504, %v490, -inf
      %512 = vmax.xlane.f32.xlu0 %v511
      %v513 = vpop.xlane.xlu0 %512
      %v514 = vsel %vm504, %v491, -inf
      %515 = vmax.xlane.f32.xlu0 %v514
      %v516 = vpop.xlane.xlu0 %515
      %v517 = vsel %vm504, %v492, -inf
      %518 = vmax.xlane.f32.xlu0 %v517
      %v519 = vpop.xlane.xlu0 %518
      %v520 = vsel %vm504, %v493, -inf
      %521 = vmax.xlane.f32.xlu0 %v520
      %v522 = vpop.xlane.xlu0 %521
      %v523 = vsel %vm504, %v494, -inf
      %524 = vmax.xlane.f32.xlu0 %v523
      %v525 = vpop.xlane.xlu0 %524
      %v526 = vsel %vm504, %v495, -inf
      %527 = vmax.xlane.f32.xlu0 %v526
      %v528 = vpop.xlane.xlu0 %527
      %v529 = vsel %vm504, %v496, -inf
      %530 = vmax.xlane.f32.xlu0 %v529
      %v531 = vpop.xlane.xlu0 %530
      %v532 = vsel %vm504, %v497, -inf
      %533 = vmax.xlane.f32.xlu0 %v532
      %v534 = vpop.xlane.xlu0 %533
      %v535 = vsel %vm504, %v498, -inf
      %536 = vmax.xlane.f32.xlu0 %v535
      %v537 = vpop.xlane.xlu0 %536
      %v538 = vsel %vm504, %v499, -inf
      %539 = vmax.xlane.f32.xlu0 %v538
      %v540 = vpop.xlane.xlu0 %539
      %v541 = vsel %vm504, %v500, -inf
      %542 = vmax.xlane.f32.xlu0 %v541
      %v543 = vpop.xlane.xlu0 %542
      %v544 = vsel %vm504, %v501, -inf
      %545 = vmax.xlane.f32.xlu0 %v544
      %v546 = vpop.xlane.xlu0 %545
      %v547 = vsel %vm504, %v502, -inf
      %548 = vmax.xlane.f32.xlu0 %v547
      %v549 = vpop.xlane.xlu0 %548
      %v550 = vsel %vm504, %v503, -inf
      %551 = vmax.xlane.f32.xlu0 %v550
      %v552 = vpop.xlane.xlu0 %551
      %v553 = vsub.f32 %v488, %v507
      %v554 = vsub.f32 %v489, %v510
      %v555 = vsub.f32 %v490, %v513
      %v556 = vsub.f32 %v491, %v516
      %v557 = vsub.f32 %v492, %v519
      %v558 = vsub.f32 %v493, %v522
      %v559 = vsub.f32 %v494, %v525
      %v560 = vsub.f32 %v495, %v528
      %v561 = vsub.f32 %v496, %v531
      %v562 = vsub.f32 %v497, %v534
      %v563 = vsub.f32 %v498, %v537
      %v564 = vsub.f32 %v499, %v540
      %v565 = vsub.f32 %v500, %v543
      %v566 = vsub.f32 %v501, %v546
      %v567 = vsub.f32 %v502, %v549
      %v568 = vsub.f32 %v503, %v552
      %v569 = vmul.f32 %v553, 1.442695
      %v570 = vpow.pop %v569
      %v571 = vmul.f32 %v554, 1.442695
      %v572 = vpow.pop %v571
      %v573 = vmul.f32 %v555, 1.442695
      %v574 = vpow.pop %v573
      %v575 = vmul.f32 %v556, 1.442695
      %v576 = vpow.pop %v575
      %v577 = vmul.f32 %v557, 1.442695
      %v578 = vpow.pop %v577
      %v579 = vmul.f32 %v558, 1.442695
      %v580 = vpow.pop %v579
      %v581 = vmul.f32 %v559, 1.442695
      %v582 = vpow.pop %v581
      %v583 = vmul.f32 %v560, 1.442695
      %v584 = vpow.pop %v583
      %v585 = vmul.f32 %v561, 1.442695
      %v586 = vpow.pop %v585
      %v587 = vmul.f32 %v562, 1.442695
      %v588 = vpow.pop %v587
      %v589 = vmul.f32 %v563, 1.442695
      %v590 = vpow.pop %v589
      %v591 = vmul.f32 %v564, 1.442695
      %v592 = vpow.pop %v591
      %v593 = vmul.f32 %v565, 1.442695
      %v594 = vpow.pop %v593
      %v595 = vmul.f32 %v566, 1.442695
      %v596 = vpow.pop %v595
      %v597 = vmul.f32 %v567, 1.442695
      %v598 = vpow.pop %v597
      %v599 = vmul.f32 %v568, 1.442695
      %v600 = vpow.pop %v599
      %v601 = vsel %vm504, %v570, 0.0
      %602 = vadd.xlane.f32.xlu0 %v601
      %v603 = vpop.xlane.xlu0 %602
      %v604 = vsel %vm504, %v572, 0.0
      %605 = vadd.xlane.f32.xlu0 %v604
      %v606 = vpop.xlane.xlu0 %605
      %v607 = vsel %vm504, %v574, 0.0
      %608 = vadd.xlane.f32.xlu0 %v607
      %v609 = vpop.xlane.xlu0 %608
      %v610 = vsel %vm504, %v576, 0.0
      %611 = vadd.xlane.f32.xlu0 %v610
      %v612 = vpop.xlane.xlu0 %611
      %v613 = vsel %vm504, %v578, 0.0
      %614 = vadd.xlane.f32.xlu0 %v613
      %v615 = vpop.xlane.xlu0 %614
      %v616 = vsel %vm504, %v580, 0.0
      %617 = vadd.xlane.f32.xlu0 %v616
      %v618 = vpop.xlane.xlu0 %617
      %v619 = vsel %vm504, %v582, 0.0
      %620 = vadd.xlane.f32.xlu0 %v619
      %v621 = vpop.xlane.xlu0 %620
      %v622 = vsel %vm504, %v584, 0.0
      %623 = vadd.xlane.f32.xlu0 %v622
      %v624 = vpop.xlane.xlu0 %623
      %v625 = vsel %vm504, %v586, 0.0
      %626 = vadd.xlane.f32.xlu0 %v625
      %v627 = vpop.xlane.xlu0 %626
      %v628 = vsel %vm504, %v588, 0.0
      %629 = vadd.xlane.f32.xlu0 %v628
      %v630 = vpop.xlane.xlu0 %629
      %v631 = vsel %vm504, %v590, 0.0
      %632 = vadd.xlane.f32.xlu0 %v631
      %v633 = vpop.xlane.xlu0 %632
      %v634 = vsel %vm504, %v592, 0.0
      %635 = vadd.xlane.f32.xlu0 %v634
      %v636 = vpop.xlane.xlu0 %635
      %v637 = vsel %vm504, %v594, 0.0
      %638 = vadd.xlane.f32.xlu0 %v637
      %v639 = vpop.xlane.xlu0 %638
      %v640 = vsel %vm504, %v596, 0.0
      %641 = vadd.xlane.f32.xlu0 %v640
      %v642 = vpop.xlane.xlu0 %641
      %v643 = vsel %vm504, %v598, 0.0
      %644 = vadd.xlane.f32.xlu0 %v643
      %v645 = vpop.xlane.xlu0 %644
      %v646 = vsel %vm504, %v600, 0.0
      %647 = vadd.xlane.f32.xlu0 %v646
      %v648 = vpop.xlane.xlu0 %647
      %v649 = vrcp.pop %v603
      %v650 = vrcp.pop %v606
      %v651 = vrcp.pop %v609
      %v652 = vrcp.pop %v612
      %v653 = vrcp.pop %v615
      %v654 = vrcp.pop %v618
      %v655 = vrcp.pop %v621
      %v656 = vrcp.pop %v624
      %v657 = vrcp.pop %v627
      %v658 = vrcp.pop %v630
      %v659 = vrcp.pop %v633
      %v660 = vrcp.pop %v636
      %v661 = vrcp.pop %v639
      %v662 = vrcp.pop %v642
      %v663 = vrcp.pop %v645
      %v664 = vrcp.pop %v648
      %v665 = vmul.f32 %v570, %v649
      %v666 = vmul.f32 %v572, %v650
      %v667 = vmul.f32 %v574, %v651
      %v668 = vmul.f32 %v576, %v652
      %v669 = vmul.f32 %v578, %v653
      %v670 = vmul.f32 %v580, %v654
      %v671 = vmul.f32 %v582, %v655
      %v672 = vmul.f32 %v584, %v656
      %v673 = vmul.f32 %v586, %v657
      %v674 = vmul.f32 %v588, %v658
      %v675 = vmul.f32 %v590, %v659
      %v676 = vmul.f32 %v592, %v660
      %v677 = vmul.f32 %v594, %v661
      %v678 = vmul.f32 %v596, %v662
      %v679 = vmul.f32 %v598, %v663
      %v680 = vmul.f32 %v600, %v664
      %681 = vst.msk [vmem:[%s228] sm:$0xff] %vm504, %v665
      %682 = vst.msk [vmem:[%s228 + $0x8] sm:$0xff] %vm504, %v666
      %683 = vst.msk [vmem:[%s228 + $0x10] sm:$0xff] %vm504, %v667
      %684 = vst.msk [vmem:[%s228 + $0x18] sm:$0xff] %vm504, %v668
      %685 = vst.msk [vmem:[%s228 + $0x20] sm:$0xff] %vm504, %v669
      %686 = vst.msk [vmem:[%s228 + $0x28] sm:$0xff] %vm504, %v670
      %687 = vst.msk [vmem:[%s228 + $0x30] sm:$0xff] %vm504, %v671
      %688 = vst.msk [vmem:[%s228 + $0x38] sm:$0xff] %vm504, %v672
      %689 = vst.msk [vmem:[%s228 + $0x40] sm:$0xff] %vm504, %v673
      %690 = vst.msk [vmem:[%s228 + $0x48] sm:$0xff] %vm504, %v674
      %691 = vst.msk [vmem:[%s228 + $0x50] sm:$0xff] %vm504, %v675
      %692 = vst.msk [vmem:[%s228 + $0x58] sm:$0xff] %vm504, %v676
      %693 = vst.msk [vmem:[%s228 + $0x60] sm:$0xff] %vm504, %v677
      %694 = vst.msk [vmem:[%s228 + $0x68] sm:$0xff] %vm504, %v678
      %695 = vst.msk [vmem:[%s228 + $0x70] sm:$0xff] %vm504, %v679
      %696 = vst.msk [vmem:[%s228 + $0x78] sm:$0xff] %vm504, %v680
      %s697 = smul.u32 16, %s18
      %p698 = scmp.lt.s32.totalorder %s697, 31
      %s699 = scalar_select %p698, %s697, 31
      %s700 = smul.addr %s699, 8
      %s701 = scalar_lea.vmem %s5, %s700
      // Predicated region
      $region41: #{tpu_custom_call.1} parent=39 // pred_check
        %p702 = pneg %p146
      $region42: #{tpu_custom_call.1} parent=39 // pred_check_branch
        %704 = sbr.rel (%p702) target = $region44
      $region43: #{tpu_custom_call.1} parent=39 // pred_region
        %s705 = smul.u32 16, %s18
      $region44: #{tpu_custom_call.1} parent=39 // pred_fallthru
        _
    $region40: #{tpu_custom_call.1} parent=5 // pred_fallthru
      _
    %p706 = scmp.le.s32.totalorder 2, %s13
    // Predicated region
    $region45: #{tpu_custom_call.1} parent=5 // pred_check
      %p707 = pneg %p706
    $region46: #{tpu_custom_call.1} parent=5 // pred_check_branch
      %709 = sbr.rel (%p707) target = $region48
    $region47: #{tpu_custom_call.1} parent=5 // pred_region
      %s710 = ssub.s32 %s13, 2
      // Predicated region
      $region49: #{tpu_custom_call.1} parent=47 // pred_check
        %p711 = pneg %p152
      $region50: #{tpu_custom_call.1} parent=47 // pred_check_branch
        %713 = sbr.rel (%p711) target = $region52
      $region51: #{tpu_custom_call.1} parent=47 // pred_region
        %s714 = smul.u32 16, %s19
        %p715 = scmp.lt.s32.totalorder %s714, 31
        %s716 = scalar_select %p715, %s714, 31
        %s717 = smul.addr %s716, 8
        %s718 = scalar_lea.vmem %s5, %s717
      $region52: #{tpu_custom_call.1} parent=47 // pred_fallthru
        _
    $region48: #{tpu_custom_call.1} parent=5 // pred_fallthru
      _
  $region6: #{tpu_custom_call.1} parent=0 // loop_footer
    %s17 = sadd.s32 1, %s13
  $region7: #{tpu_custom_call.1} parent=0 // loop_footer_branch
    %12 = sbr.rel target = $region3
  $region8: #{tpu_custom_call.1} parent=0 // loop_exit
    _

</llo_original>
